<compile_context>
chip_gen: v7x
topology: tpu7x:2x2x1
jax: 0.10.0
libtpu: 0.0.40
codegen_flags: <defaults>
</compile_context>

<pallas_src>
from functools import partial

import jax
import jax.numpy as jnp
from jax import lax
from jax.experimental import pallas as pl
from jax.experimental.pallas import tpu as pltpu


def _round_up(x, m):
    return (x + m - 1) // m * m


def _pass1_tile_target():
    """Pass-1 pixel-row tile target: 512 on v6e/v7x (DMA-bound), 256 on v5e."""
    try:
        kind = jax.devices()[0].device_kind.lower()
    except Exception:
        kind = ""
    return 256 if "v5" in kind else 512


def _vmem_cap():
    """Generation-aware scoped-VMEM cap (~0.75x physical; v7x has only 64 MiB)."""
    try:
        cap = int(pltpu.get_tpu_info().vmem_capacity_bytes)
    except Exception:
        cap = 64 << 20
    return max((cap * 3) // 4, 32 << 20)


def _pick_row_tile(P, target):
    """Largest per-image pixel tile <= target keeping the BlockSpec legal:
    either the full image (block dim == array dim) or a multiple-of-8 divisor
    of P.  Typical conv feature maps (P = H*W) always have a good divisor."""
    if P <= target or P % 8 != 0:
        return P
    t = target - target % 8
    for cand in range(t, 7, -8):
        if P % cand == 0:
            return cand
    return P


# ---------------------------------------------------------------------------
# Pass 1: y = relu(x) @ w1   (1x1 conv over flattened pixels of one image)
#         + per-tile per-channel [sum, sum of squares] BN partials.
# ---------------------------------------------------------------------------
def _pass1_kernel(x_ref, w1_ref, y_ref, stats_ref):
    # x_ref: (1, TM, Cin) f32 | w1_ref: (Cin, Cmidp) bf16
    # y_ref: (1, TM, Cmidp) bf16 | stats_ref: (1, 1, 2, Cmidp) f32
    x = jnp.maximum(x_ref[0], 0.0).astype(jnp.bfloat16)       # ReLU -> bf16 MXU lhs
    y = jnp.dot(x, w1_ref[...], preferred_element_type=jnp.float32)  # (TM, Cmidp) f32
    y_ref[0] = y.astype(jnp.bfloat16)                          # bf16 intermediate
    # stats from the f32 accumulator, written directly (no concat temp)
    stats_ref[0, 0, 0:1, :] = jnp.sum(y, axis=0, keepdims=True)
    stats_ref[0, 0, 1:2, :] = jnp.sum(y * y, axis=0, keepdims=True)


# ---------------------------------------------------------------------------
# Pass 2: z = relu(y*scale + shift);  out = conv3x3(z), pad=1, no bias.
#         9 per-tap matmuls; tap shifts applied to the outputs via roll + mask.
# ---------------------------------------------------------------------------
def _pass2_kernel(y_ref, scale_ref, shift_ref, w2_ref, out_ref, *,
                  TH, H, W, Coutp):
    # y_ref: (1, H*W, Cmidp) bf16 (full image; block index constant over hb)
    # scale_ref/shift_ref: (1, Cmidp) f32 | w2_ref: (9, Cmidp, Coutp) bf16
    # out_ref: (1, TH, W, Coutp) f32
    hb = pl.program_id(1)
    nhb = pl.num_programs(1)
    TP = TH * W                  # output pixels in this chunk
    ZR = (TH + 2) * W            # chunk pixels + one halo image-row above/below

    row0 = hb * TH               # first output image-row of this chunk
    scale = scale_ref[...]       # (1, Cmidp), broadcasts over pixels
    shift = shift_ref[...]

    # Gather the chunk rows plus one-row halos (flat layout: an image row is W
    # consecutive flat rows), apply BN affine + ReLU in one fused f32 sweep.
    top = y_ref[0, pl.ds(jnp.maximum(row0 - 1, 0) * W, W), :]
    mid = y_ref[0, pl.ds(row0 * W, TP), :]
    bot = y_ref[0, pl.ds(jnp.minimum(row0 + TH, H - 1) * W, W), :]
    rows = jnp.concatenate([top, mid, bot], axis=0).astype(jnp.float32)  # (ZR, C)
    z = jnp.maximum(rows * scale + shift, 0.0)

    # Conv zero padding: halo rows outside the image are zero AFTER BN+ReLU.
    li = lax.broadcasted_iota(jnp.int32, (ZR, 1), 0)
    keep = jnp.logical_and(jnp.logical_or(li >= W, hb > 0),
                           jnp.logical_or(li < W + TP, hb < nhb - 1))
    zf = jnp.where(keep, z, 0.0).astype(jnp.bfloat16)          # (ZR, Cmidp) MXU lhs

    # Column-edge masks for the +-1 width shifts (output position p has col p%W).
    col = lax.broadcasted_iota(jnp.int32, (TP, 1), 0) % W
    not_first_col = col != 0
    not_last_col = col != (W - 1)

    acc = jnp.zeros((TP, Coutp), jnp.float32)
    for dh in range(3):
        for dw in range(3):
            r = jnp.dot(zf, w2_ref[dh * 3 + dw],
                        preferred_element_type=jnp.float32)    # (ZR, Coutp)
            # source pixel for output p is local flat index p + off
            off = dh * W + (dw - 1)
            if off != 0:
                r = pltpu.roll(r, shift=(-off) % ZR, axis=0)   # r[p] <- R[p+off]
            r = r[:TP, :]
            if dw == 0:
                r = jnp.where(not_first_col, r, 0.0)
            elif dw == 2:
                r = jnp.where(not_last_col, r, 0.0)
            acc = acc + r

    out_ref[...] = acc.reshape(1, TH, W, Coutp)                # lane-dense store


def fused_relu_conv_bn_relu_conv(x, w1, gamma, beta, w2, *, eps=1e-5):
    """x: (N,H,W,Cin) f32 NHWC; w1: (Cin,Cmid); gamma/beta: (Cmid,);
    w2: (3,3,Cmid,Cout) HWIO. Returns (N,H,W,Cout) f32."""
    N, H, W, Cin = x.shape
    Cmid = w1.shape[1]
    Cout = w2.shape[3]
    P = H * W

    Cmidp = _round_up(Cmid, 128)
    Coutp = _round_up(Cout, 128)
    cap = _vmem_cap()

    # ---------------- pass 1 ----------------
    TM = _pick_row_tile(P, _pass1_tile_target())
    n_tiles = P // TM
    x3 = x.reshape(N, P, Cin)
    w1p = jnp.pad(w1, ((0, 0), (0, Cmidp - Cmid))).astype(jnp.bfloat16)

    need1 = 2 * (TM * Cin * 4 + Cin * Cmidp * 2 + TM * Cmidp * 2 + 2 * Cmidp * 4)
    vmem1 = int(min(max(need1 + (8 << 20), 32 << 20), cap))

    y, stats = pl.pallas_call(
        _pass1_kernel,
        grid=(N, n_tiles),
        in_specs=[
            pl.BlockSpec((1, TM, Cin), lambda n, t: (n, t, 0)),
            pl.BlockSpec((Cin, Cmidp), lambda n, t: (0, 0)),
        ],
        out_specs=(
            pl.BlockSpec((1, TM, Cmidp), lambda n, t: (n, t, 0)),
            pl.BlockSpec((1, 1, 2, Cmidp), lambda n, t: (n, t, 0, 0)),
        ),
        out_shape=(
            jax.ShapeDtypeStruct((N, P, Cmidp), jnp.bfloat16),
            jax.ShapeDtypeStruct((N, n_tiles, 2, Cmidp), jnp.float32),
        ),
        compiler_params=pltpu.CompilerParams(
            dimension_semantics=("parallel", "parallel"),
            vmem_limit_bytes=vmem1),
    )(x3, w1p)

    # -------- BN constants (PyTorch training forward: biased batch variance) ----
    count = float(N * P)
    s = jnp.sum(stats[:, :, 0, :], axis=(0, 1))
    ss = jnp.sum(stats[:, :, 1, :], axis=(0, 1))
    mean = s / count
    var = jnp.maximum(ss / count - mean * mean, 0.0)
    gamma_p = jnp.pad(gamma.astype(jnp.float32), (0, Cmidp - Cmid))
    beta_p = jnp.pad(beta.astype(jnp.float32), (0, Cmidp - Cmid))
    scale_v = gamma_p * lax.rsqrt(var + eps)
    shift_v = beta_p - mean * scale_v
    scale = scale_v.reshape(1, Cmidp)
    shift = shift_v.reshape(1, Cmidp)

    # ---------------- pass 2 ----------------
    # >=2 parallel grid steps when possible (keeps both v7x TensorCores busy).
    S = 1 if N >= 2 else (2 if (H % 2 == 0 and H >= 4) else 1)
    TH = H // S
    TP = TH * W
    ZR = (TH + 2) * W

    w2p = jnp.pad(w2, ((0, 0), (0, 0), (0, Cmidp - Cmid), (0, Coutp - Cout)))
    w2p = w2p.reshape(9, Cmidp, Coutp).astype(jnp.bfloat16)    # tap index = dh*3+dw

    # TODO(synk): for very large feature maps, tile y with a row halo instead of
    # the full-image block (only matters well above the 14x14 DenseNet stage).
    need2 = (2 * (P * Cmidp * 2 + 2 * Cmidp * 4 + 9 * Cmidp * Coutp * 2
                  + TP * Coutp * 4)
             + ZR * Cmidp * 8 + 4 * ZR * Coutp * 4)
    vmem2 = int(min(max(need2 + (8 << 20), 32 << 20), cap))

    out_p = pl.pallas_call(
        partial(_pass2_kernel, TH=TH, H=H, W=W, Coutp=Coutp),
        grid=(N, S),
        in_specs=[
            pl.BlockSpec((1, P, Cmidp), lambda n, hb: (n, 0, 0)),
            pl.BlockSpec((1, Cmidp), lambda n, hb: (0, 0)),
            pl.BlockSpec((1, Cmidp), lambda n, hb: (0, 0)),
            pl.BlockSpec((9, Cmidp, Coutp), lambda n, hb: (0, 0, 0)),
        ],
        out_specs=pl.BlockSpec((1, TH, W, Coutp), lambda n, hb: (n, hb, 0, 0)),
        out_shape=jax.ShapeDtypeStruct((N, H, W, Coutp), jnp.float32),
        compiler_params=pltpu.CompilerParams(
            dimension_semantics=("parallel", "parallel"),
            vmem_limit_bytes=vmem2),
    )(y, scale, shift, w2p)

    # TODO(synk): this channel slice costs one extra HBM read+write of the
    # output; a fused consumer could accept the Coutp(=128)-padded layout.
    return out_p[..., :Cout]


def reference(x, w1, gamma, beta, w2, eps=1e-5):
    """Plain-JAX f32 reference with identical module semantics (NHWC)."""
    N, H, W, Cin = x.shape
    Cout = w2.shape[3]
    xr = jnp.maximum(x, 0.0)
    y = jnp.einsum("nhwc,cd->nhwd", xr, w1)
    mean = jnp.mean(y, axis=(0, 1, 2), keepdims=True)
    var = jnp.mean((y - mean) ** 2, axis=(0, 1, 2), keepdims=True)
    z = (y - mean) * lax.rsqrt(var + eps)
    z = z * gamma.reshape(1, 1, 1, -1) + beta.reshape(1, 1, 1, -1)
    z = jnp.maximum(z, 0.0)
    zp = jnp.pad(z, ((0, 0), (1, 1), (1, 1), (0, 0)))
    out = jnp.zeros((N, H, W, Cout), jnp.float32)
    for dh in range(3):
        for dw in range(3):
            out = out + jnp.einsum("nhwc,cd->nhwd",
                                   zp[:, dh:dh + H, dw:dw + W, :], w2[dh, dw])
    return out


if __name__ == "__main__":
    # Small shapes consistent with the module structure
    # (real module: N=1, Cin=2016, Cmid=192, Cout=48, spatial 14x14).
    # N=1 + spatial 24 exercises both the multi-tile pass-1 stats reduction and
    # the two-row-chunk (halo) path of pass 2 that the real N=1 case uses.
    N, H, W = 1, 24, 24
    Cin, Cmid, Cout = 128, 64, 32

    key = jax.random.PRNGKey(0)
    kx, k1, k2, kg, kb = jax.random.split(key, 5)

    x = jax.random.normal(kx, (N, H, W, Cin), dtype=jnp.float32)
    w1 = jax.random.normal(k1, (Cin, Cmid), dtype=jnp.float32) * 0.05
    w2 = jax.random.normal(k2, (3, 3, Cmid, Cout), dtype=jnp.float32) * 0.05
    gamma = 1.0 + 0.1 * jax.random.normal(kg, (Cmid,), dtype=jnp.float32)
    beta = 0.1 * jax.random.normal(kb, (Cmid,), dtype=jnp.float32)

    out = fused_relu_conv_bn_relu_conv(x, w1, gamma, beta, w2)
    out = jax.block_until_ready(out)

    ref = reference(x, w1, gamma, beta, w2)
    assert out.shape == (N, H, W, Cout)
    err = float(jnp.max(jnp.abs(out - ref)))
    # bf16 MXU operands + bf16 intermediate y, f32 accumulation everywhere
    assert jnp.allclose(out, ref, rtol=4e-2, atol=4e-2), f"max abs err {err}"
    print("KERNEL_OK")
</pallas_src>

<mosaic_0001>
module attributes {stable_mosaic.version = 11 : i64} {
  func.func @_pass1_kernel(%arg0: i32, %arg1: i32, %arg2: memref<1x288x128xf32, #tpu.memory_space<vmem>>, %arg3: memref<128x128xbf16, #tpu.memory_space<vmem>>, %arg4: memref<1x288x128xbf16, #tpu.memory_space<vmem>>, %arg5: memref<1x1x2x128xf32, #tpu.memory_space<vmem>>) attributes {dimension_semantics = [#tpu.dimension_semantics<parallel>, #tpu.dimension_semantics<parallel>], iteration_bounds = array<i64: 1, 2>, scalar_prefetch = 0 : i64, scratch_operands = 0 : i64, tpu.core_type = #tpu.core_type<tc>, window_params = [{transform_indices = @transform_0, window_bounds = array<i64: 1, 288, 128>}, {pipeline_mode = #tpu.pipeline_mode<synchronous>, transform_indices = @transform_1, window_bounds = array<i64: 128, 128>}, {transform_indices = @transform_2, window_bounds = array<i64: 1, 288, 128>}, {transform_indices = @transform_3, window_bounds = array<i64: 1, 1, 2, 128>}]} {
    %c0 = arith.constant 0 : index
    %c0_0 = arith.constant 0 : index
    %c0_1 = arith.constant 0 : index
    %0 = vector.load %arg2[%c0, %c0_0, %c0_1] : memref<1x288x128xf32, #tpu.memory_space<vmem>>, vector<1x288x128xf32>
    %1 = vector.shape_cast %0 : vector<1x288x128xf32> to vector<288x128xf32>
    %cst = arith.constant 0.000000e+00 : f32
    %2 = vector.broadcast %cst : f32 to vector<288x128xf32>
    %3 = arith.maximumf %1, %2 : vector<288x128xf32>
    %4 = arith.truncf %3 : vector<288x128xf32> to vector<288x128xbf16>
    %c0_2 = arith.constant 0 : index
    %c0_3 = arith.constant 0 : index
    %5 = vector.load %arg3[%c0_2, %c0_3] : memref<128x128xbf16, #tpu.memory_space<vmem>>, vector<128x128xbf16>
    %cst_4 = arith.constant dense<0.000000e+00> : vector<288x128xf32>
    %6 = tpu.matmul %4, %5, %cst_4 {dimension_numbers = #tpu.dot_dimension_numbers<[1], [0], [0], [1], [0, 0, 1, 1], [], []>} : vector<288x128xbf16>, vector<128x128xbf16>, vector<288x128xf32> -> vector<288x128xf32>
    %7 = arith.truncf %6 : vector<288x128xf32> to vector<288x128xbf16>
    %c0_5 = arith.constant 0 : index
    %c0_6 = arith.constant 0 : index
    %c0_7 = arith.constant 0 : index
    %8 = vector.load %arg4[%c0_5, %c0_6, %c0_7] : memref<1x288x128xbf16, #tpu.memory_space<vmem>>, vector<1x288x128xbf16>
    %9 = vector.shape_cast %8 : vector<1x288x128xbf16> to vector<288x128xbf16>
    %10 = vector.shape_cast %7 : vector<288x128xbf16> to vector<1x288x128xbf16>
    tpu.vector_store %arg4[%c0_5, %c0_6, %c0_7], %10 {strides = array<i32>} : memref<1x288x128xbf16, #tpu.memory_space<vmem>>, vector<1x288x128xbf16>,
    %cst_8 = arith.constant dense<0.000000e+00> : vector<128xf32>
    %11 = vector.multi_reduction <add>, %6, %cst_8 [0] : vector<288x128xf32> to vector<128xf32>
    %12 = vector.shape_cast %11 : vector<128xf32> to vector<1x128xf32>
    %c0_9 = arith.constant 0 : index
    %c0_10 = arith.constant 0 : index
    %c0_11 = arith.constant 0 : index
    %c0_12 = arith.constant 0 : index
    %13 = vector.load %arg5[%c0_9, %c0_10, %c0_11, %c0_12] : memref<1x1x2x128xf32, #tpu.memory_space<vmem>>, vector<1x1x1x128xf32>
    %14 = vector.shape_cast %13 : vector<1x1x1x128xf32> to vector<1x128xf32>
    %15 = vector.shape_cast %12 : vector<1x128xf32> to vector<1x1x1x128xf32>
    tpu.vector_store %arg5[%c0_9, %c0_10, %c0_11, %c0_12], %15 {strides = array<i32>} : memref<1x1x2x128xf32, #tpu.memory_space<vmem>>, vector<1x1x1x128xf32>,
    %16 = arith.mulf %6, %6 : vector<288x128xf32>
    %cst_13 = arith.constant dense<0.000000e+00> : vector<128xf32>
    %17 = vector.multi_reduction <add>, %16, %cst_13 [0] : vector<288x128xf32> to vector<128xf32>
    %18 = vector.shape_cast %17 : vector<128xf32> to vector<1x128xf32>
    %c0_14 = arith.constant 0 : index
    %c0_15 = arith.constant 0 : index
    %c1 = arith.constant 1 : index
    %c0_16 = arith.constant 0 : index
    %19 = vector.load %arg5[%c0_14, %c0_15, %c1, %c0_16] : memref<1x1x2x128xf32, #tpu.memory_space<vmem>>, vector<1x1x1x128xf32>
    %20 = vector.shape_cast %19 : vector<1x1x1x128xf32> to vector<1x128xf32>
    %21 = vector.shape_cast %18 : vector<1x128xf32> to vector<1x1x1x128xf32>
    tpu.vector_store %arg5[%c0_14, %c0_15, %c1, %c0_16], %21 {strides = array<i32>} : memref<1x1x2x128xf32, #tpu.memory_space<vmem>>, vector<1x1x1x128xf32>,
    return
  }
  func.func @transform_0(%arg0: i32, %arg1: i32) -> (i32, i32, i32) {
    %c0_i32 = arith.constant 0 : i32
    %c0_i32_0 = arith.constant 0 : i32
    return %arg0, %arg1, %c0_i32 : i32, i32, i32
  }
  func.func @transform_1(%arg0: i32, %arg1: i32) -> (i32, i32) {
    %c0_i32 = arith.constant 0 : i32
    %c0_i32_0 = arith.constant 0 : i32
    %c0_i32_1 = arith.constant 0 : i32
    return %c0_i32, %c0_i32_0 : i32, i32
  }
  func.func @transform_2(%arg0: i32, %arg1: i32) -> (i32, i32, i32) {
    %c0_i32 = arith.constant 0 : i32
    %c0_i32_0 = arith.constant 0 : i32
    return %arg0, %arg1, %c0_i32 : i32, i32, i32
  }
  func.func @transform_3(%arg0: i32, %arg1: i32) -> (i32, i32, i32, i32) {
    %c0_i32 = arith.constant 0 : i32
    %c0_i32_0 = arith.constant 0 : i32
    %c0_i32_1 = arith.constant 0 : i32
    return %arg0, %arg1, %c0_i32, %c0_i32_0 : i32, i32, i32, i32
  }
}

</mosaic_0001>

<llo_original>
// kernel: tpu_custom_call.1
$region0: #{tpu_custom_call.1}
  #allocation0 [shape = 'u32[]', space=smem, size = 0x4, offset = 0x4, fixed_abs, tag = 'smem constant byte address 0x4 - core index']
  #allocation1 [shape = 'u32[144,128]{1,0:T(1,128)}', space=vmem, size = 0x12000, scoped, tag = 'internal scratch']
  %s0 = inlined_call_operand.hbm [shape: f32[1,576,128], index: 0, kind: input, shape index: {}]
  %s1 = inlined_call_operand.hbm [shape: bf16[128,128], index: 1, kind: input, shape index: {}]
  %s2 = inlined_call_operand.hbm [shape: bf16[1,576,128], index: 2, kind: output, shape index: {0}]
  %s3 = inlined_call_operand.hbm [shape: f32[1,2,2,128], index: 3, kind: output, shape index: {1}]
  %4 = xla_tuple %s2, %s3
  %s5 = sld [smem:[#allocation0]]
  $region57: #{tpu_custom_call.1} parent=0
    _
  %s7 = ssub.s32 1, %s5
  %s8 = scalar_select 0, %s7, %s5
  $region1: #{tpu_custom_call.1} parent=0
    #allocation2 [shape = 'u8[294912]{0}', space=vmem, size = 0x48000, scoped, tag = 'input window, operand 0']
    #allocation3 [shape = 's32[2]{0}', space=sflag, size = 0x8, scoped, tag = 'scoped memory for tpu_custom_call.1']
    #allocation4 [shape = 's32[2]{0}', space=sflag, size = 0x8, scoped, tag = 'scoped memory for tpu_custom_call.1']
    #allocation5 [shape = 'u8[32768]{0}', space=vmem, size = 0x8000, scoped, tag = 'input window, operand 1, single buffered']
    #allocation6 [shape = 's32[1]{0}', space=sflag, size = 0x4, scoped, tag = 'scoped memory for tpu_custom_call.1']
    #allocation7 [shape = 'u8[147456]{0}', space=vmem, size = 0x24000, scoped, tag = 'output window, operand 0']
    #allocation8 [shape = 'u8[2048]{0}', space=vmem, size = 0x800, scoped, tag = 'output window, operand 1']
    #allocation9 [shape = 's32[2]{0}', space=sflag, size = 0x8, scoped, tag = 'scoped memory for tpu_custom_call.1']
    %9 = vsyncpa [#allocation3], 0
    %s10 = scalar_lea.sflag [#allocation3], 1
    %11 = vsyncpa %s10, 0
    %12 = vsyncpa [#allocation6], 0
    %13 = vsyncpa [#allocation4], 0
    %s14 = scalar_lea.sflag [#allocation4], 1
    %15 = vsyncpa %s14, 0
    %16 = vsyncpa [#allocation9], 0
    %s17 = scalar_lea.sflag [#allocation9], 1
    %18 = vsyncpa %s17, 0
    loop: start=0, step=1, limit=4
    $region2: #{tpu_custom_call.1} parent=1 // loop_pre_header
      _
    $region3: #{tpu_custom_call.1} parent=1 // loop_header
      %s20 = sphi 0, %s24
      %p21 = scmp.ge.s32.totalorder %s20, 4
      %s27 = sphi 0, %s39
      %s28 = sphi 0, %s35
      %s29 = sphi 0, %s27
      %s30 = sphi 0, %s28
      %s31 = sphi 0, %s29
      %s32 = sphi 0, %s30
      %s44 = sphi 0, %s46
      %s47 = sphi 0, %s44
      %s48 = sphi 0, %s47
      %s64 = sphi 0, %s48
      %s68 = sphi 0, %s68
      %s70 = sphi 0, %s68
      %s71 = sphi 0, %s70
      %s85 = sphi 0, %s71
      %s93 = sphi 0, %s95
      %s96 = sphi 0, %s93
      %s97 = sphi 0, %s96
      %s113 = sphi 0, %s97
      %s121 = sphi 0, %s123
      %s124 = sphi 0, %s121
      %s125 = sphi 0, %s124
      %s141 = sphi 0, %s125
    $region4: #{tpu_custom_call.1} parent=1 // loop_header_branch
      %23 = sbr.rel (%p21) target = $region8
    $region5: #{tpu_custom_call.1} parent=1 // loop_body
      %s25 = ssub.s32 %s20, 1
      %s26 = ssub.s32 %s20, 2
      %s33 = sadd.s32 1, %s28
      %p34 = scmp.ge.s32.totalorder %s33, 2
      %s35 = scalar_select %p34, 0, %s33
      %s36 = sadd.s32 1, %s27
      %s37 = scalar_select %p34, %s36, %s27
      %p38 = scmp.ge.s32.totalorder %s37, 1
      %s39 = scalar_select %p38, 0, %s37
      %s40 = ssub.s32 %s27, %s39
      %s41 = ssub.s32 %s28, %s35
      %s42 = sor.u32 %s40, %s41
      %p43 = scmp.eq.s32.totalorder %s42, 0
      %s45 = sadd.s32 %s44, 1
      %s46 = scalar_select %p43, %s44, %s45
      %p49 = pneg %p43
      %p50 = scmp.eq.s32.totalorder %s20, 1
      %p51 = por %p49, %p50
      %p52 = scmp.ne.s32.totalorder %s44, %s47
      %p53 = scmp.eq.s32.totalorder %s20, 0
      %p54 = por %p52, %p53
      %p55 = scmp.ne.s32.totalorder %s44, %s47
      %p56 = scmp.eq.s32.totalorder %s25, 1
      %p57 = por %p55, %p56
      %p58 = scmp.ne.s32.totalorder %s47, %s48
      %p59 = scmp.eq.s32.totalorder %s25, 0
      %p60 = por %p58, %p59
      %p61 = scmp.ne.s32.totalorder %s47, %s48
      %p62 = scmp.eq.s32.totalorder %s26, 1
      %p63 = por %p61, %p62
      %p65 = scmp.ne.s32.totalorder %s48, %s64
      %p66 = scmp.eq.s32.totalorder %s26, 0
      %p67 = por %p65, %p66
      %s69 = sadd.s32 %s68, 1
      %p72 = scmp.eq.s32.totalorder %s20, 1
      %p73 = scmp.ne.s32.totalorder %s68, %s70
      %p74 = scmp.eq.s32.totalorder %s20, 0
      %p75 = por %p73, %p74
      %p76 = scmp.ne.s32.totalorder %s68, %s70
      %p77 = scmp.eq.s32.totalorder %s25, 1
      %p78 = por %p76, %p77
      %p79 = scmp.ne.s32.totalorder %s70, %s71
      %p80 = scmp.eq.s32.totalorder %s25, 0
      %p81 = por %p79, %p80
      %p82 = scmp.ne.s32.totalorder %s70, %s71
      %p83 = scmp.eq.s32.totalorder %s26, 1
      %p84 = por %p82, %p83
      %p86 = scmp.ne.s32.totalorder %s71, %s85
      %p87 = scmp.eq.s32.totalorder %s26, 0
      %p88 = por %p86, %p87
      %s89 = ssub.s32 %s27, %s39
      %s90 = ssub.s32 %s28, %s35
      %s91 = sor.u32 %s89, %s90
      %p92 = scmp.eq.s32.totalorder %s91, 0
      %s94 = sadd.s32 %s93, 1
      %s95 = scalar_select %p92, %s93, %s94
      %p98 = pneg %p92
      %p99 = scmp.eq.s32.totalorder %s20, 1
      %p100 = por %p98, %p99
      %p101 = scmp.ne.s32.totalorder %s93, %s96
      %p102 = scmp.eq.s32.totalorder %s20, 0
      %p103 = por %p101, %p102
      %p104 = scmp.ne.s32.totalorder %s93, %s96
      %p105 = scmp.eq.s32.totalorder %s25, 1
      %p106 = por %p104, %p105
      %p107 = scmp.ne.s32.totalorder %s96, %s97
      %p108 = scmp.eq.s32.totalorder %s25, 0
      %p109 = por %p107, %p108
      %p110 = scmp.ne.s32.totalorder %s96, %s97
      %p111 = scmp.eq.s32.totalorder %s26, 1
      %p112 = por %p110, %p111
      %p114 = scmp.ne.s32.totalorder %s97, %s113
      %p115 = scmp.eq.s32.totalorder %s26, 0
      %p116 = por %p114, %p115
      %s117 = ssub.s32 %s27, %s39
      %s118 = ssub.s32 %s28, %s35
      %s119 = sor.u32 %s117, %s118
      %p120 = scmp.eq.s32.totalorder %s119, 0
      %s122 = sadd.s32 %s121, 1
      %s123 = scalar_select %p120, %s121, %s122
      %p126 = pneg %p120
      %p127 = scmp.eq.s32.totalorder %s20, 1
      %p128 = por %p126, %p127
      %p129 = scmp.ne.s32.totalorder %s121, %s124
      %p130 = scmp.eq.s32.totalorder %s20, 0
      %p131 = por %p129, %p130
      %p132 = scmp.ne.s32.totalorder %s121, %s124
      %p133 = scmp.eq.s32.totalorder %s25, 1
      %p134 = por %p132, %p133
      %p135 = scmp.ne.s32.totalorder %s124, %s125
      %p136 = scmp.eq.s32.totalorder %s25, 0
      %p137 = por %p135, %p136
      %p138 = scmp.ne.s32.totalorder %s124, %s125
      %p139 = scmp.eq.s32.totalorder %s26, 1
      %p140 = por %p138, %p139
      %p142 = scmp.ne.s32.totalorder %s125, %s141
      %p143 = scmp.eq.s32.totalorder %s26, 0
      %p144 = por %p142, %p143
      %p145 = scmp.le.s32.totalorder 1, %s20
      %p146 = scmp.lt.s32.totalorder %s20, 3
      %p147 = pnand %p145, %p146
      %p148 = pneg %p147
      // Predicated region
      $region9: #{tpu_custom_call.1} parent=5 // pred_check
        _
      $region10: #{tpu_custom_call.1} parent=5 // pred_check_branch
        %150 = sbr.rel (%p147) target = $region12
      $region11: #{tpu_custom_call.1} parent=5 // pred_region
        %s151 = ssub.s32 %s20, 1
        // Predicated region
        $region13: #{tpu_custom_call.1} parent=11 // pred_check
          %p152 = pneg %p81
        $region14: #{tpu_custom_call.1} parent=11 // pred_check_branch
          %154 = sbr.rel (%p152) target = $region16
        $region15: #{tpu_custom_call.1} parent=11 // pred_region
          %s156 = ssub.s32 1024, 1024
          %157 = vsyncadd [#allocation6], %s156
          %s158 = sshll.u32 [#allocation5], 4
          %s159 = int_to_ptr.vmem [resolvable:$true] %s158
          %164 = dma.hbm_to_vmem [thread:$0]  %s1, 1024, %s159, [#allocation6], 64, 64, 4
        $region16: #{tpu_custom_call.1} parent=11 // pred_fallthru
          _
      $region12: #{tpu_custom_call.1} parent=5 // pred_fallthru
        _
      %p165 = scmp.lt.s32.totalorder %s20, 2
      // Predicated region
      $region17: #{tpu_custom_call.1} parent=5 // pred_check
        %p166 = pneg %p165
      $region18: #{tpu_custom_call.1} parent=5 // pred_check_branch
        %168 = sbr.rel (%p166) target = $region20
      $region19: #{tpu_custom_call.1} parent=5 // pred_region
        // Predicated region
        $region21: #{tpu_custom_call.1} parent=19 // pred_check
          %p169 = pneg %p54
        $region22: #{tpu_custom_call.1} parent=19 // pred_check_branch
          %171 = sbr.rel (%p169) target = $region24
        $region23: #{tpu_custom_call.1} parent=19 // pred_region
          %s172 = sand.u32 %s44, 1
          %s173 = scalar_lea.sflag [#allocation3], %s172
          %s174 = sand.u32 %s44, 1
          %s175 = smul.addr %s174, 288
          %s176 = scalar_lea.vmem [#allocation2], %s175
          %s177 = smul.u32 36, %s28
          %s179 = ssub.s32 4608, 4608
          %180 = vsyncadd %s173, %s179
          %s181 = smul.addr %s27, 72
          %s182 = sadd.s32 %s177, %s181
          %s183 = smul.addr %s182, 128
          %s184 = scalar_lea.hbm %s0, %s183
          %s185 = sshll.u32 %s176, 4
          %s186 = int_to_ptr.vmem [resolvable:$true] %s185
          %191 = dma.hbm_to_vmem [thread:$0]  %s184, 4608, %s186, %s173, 128, 128, 8
        $region24: #{tpu_custom_call.1} parent=19 // pred_fallthru
          _
      $region20: #{tpu_custom_call.1} parent=5 // pred_fallthru
        _
      %p192 = scmp.le.s32.totalorder 1, %s20
      %p193 = scmp.lt.s32.totalorder %s20, 3
      %p194 = pnand %p192, %p193
      %p195 = pneg %p194
      // Predicated region
      $region25: #{tpu_custom_call.1} parent=5 // pred_check
        _
      $region26: #{tpu_custom_call.1} parent=5 // pred_check_branch
        %197 = sbr.rel (%p194) target = $region28
      $region27: #{tpu_custom_call.1} parent=5 // pred_region
        %s198 = ssub.s32 %s20, 1
        %s199 = sand.u32 %s47, 1
        %s200 = scalar_lea.sflag [#allocation3], %s199
        %s201 = sand.u32 %s47, 1
        %s202 = smul.addr %s201, 288
        %s203 = scalar_lea.vmem [#allocation2], %s202
        // Predicated region
        $region29: #{tpu_custom_call.1} parent=27 // pred_check
          %p204 = pneg %p60
        $region30: #{tpu_custom_call.1} parent=27 // pred_check_branch
          %206 = sbr.rel (%p204) target = $region32
        $region31: #{tpu_custom_call.1} parent=27 // pred_region
          %207 = dma.done %s200, 4608
        $region32: #{tpu_custom_call.1} parent=27 // pred_fallthru
          _
        // Predicated region
        $region33: #{tpu_custom_call.1} parent=27 // pred_check
          %p208 = pneg %p81
        $region34: #{tpu_custom_call.1} parent=27 // pred_check_branch
          %210 = sbr.rel (%p208) target = $region36
        $region35: #{tpu_custom_call.1} parent=27 // pred_region
          %211 = dma.done [#allocation6], 1024
        $region36: #{tpu_custom_call.1} parent=27 // pred_fallthru
          _
        %s212 = sand.u32 %s47, 1
        %s213 = scalar_lea.sflag [#allocation3], %s212
        %s214 = sand.u32 %s47, 1
        %s215 = smul.addr %s214, 288
        %s216 = scalar_lea.vmem [#allocation2], %s215
        %p217 = pneg %p60
        %p218 = pneg %p57
        %p219 = pneg %p81
        %p220 = pneg %p78
        %p221 = pneg %p109
        %p222 = pneg %p106
        %s223 = sand.u32 %s96, 1
        %s224 = scalar_lea.sflag [#allocation4], %s223
        %s225 = sand.u32 %s96, 1
        %s226 = smul.addr %s225, 144
        %s227 = scalar_lea.vmem [#allocation7], %s226
        %p228 = pneg %p137
        %p229 = pneg %p134
        %s230 = sand.u32 %s124, 1
        %s231 = scalar_lea.sflag [#allocation9], %s230
        %s232 = sand.u32 %s124, 1
        %s233 = smul.addr %s232, 2
        %s234 = scalar_lea.vmem [#allocation8], %s233
        %s235 = smul.u32 36, %s30
        %s236 = smul.u32 36, %s30
        %v238 = vld [vmem:[%s203] sm:$0xff]
        %v239 = vld [vmem:[%s203 + $0x8] sm:$0xff]
        %v240 = vld [vmem:[%s203 + $0x10] sm:$0xff]
        %v241 = vld [vmem:[%s203 + $0x18] sm:$0xff]
        %v242 = vld [vmem:[%s203 + $0x20] sm:$0xff]
        %v243 = vld [vmem:[%s203 + $0x28] sm:$0xff]
        %v244 = vld [vmem:[%s203 + $0x30] sm:$0xff]
        %v245 = vld [vmem:[%s203 + $0x38] sm:$0xff]
        %v246 = vld [vmem:[%s203 + $0x40] sm:$0xff]
        %v247 = vld [vmem:[%s203 + $0x48] sm:$0xff]
        %v248 = vld [vmem:[%s203 + $0x50] sm:$0xff]
        %v249 = vld [vmem:[%s203 + $0x58] sm:$0xff]
        %v250 = vld [vmem:[%s203 + $0x60] sm:$0xff]
        %v251 = vld [vmem:[%s203 + $0x68] sm:$0xff]
        %v252 = vld [vmem:[%s203 + $0x70] sm:$0xff]
        %v253 = vld [vmem:[%s203 + $0x78] sm:$0xff]
        %v254 = vld [vmem:[%s203 + $0x80] sm:$0xff]
        %v255 = vld [vmem:[%s203 + $0x88] sm:$0xff]
        %v256 = vld [vmem:[%s203 + $0x90] sm:$0xff]
        %v257 = vld [vmem:[%s203 + $0x98] sm:$0xff]
        %v258 = vld [vmem:[%s203 + $0xa0] sm:$0xff]
        %v259 = vld [vmem:[%s203 + $0xa8] sm:$0xff]
        %v260 = vld [vmem:[%s203 + $0xb0] sm:$0xff]
        %v261 = vld [vmem:[%s203 + $0xb8] sm:$0xff]
        %v262 = vld [vmem:[%s203 + $0xc0] sm:$0xff]
        %v263 = vld [vmem:[%s203 + $0xc8] sm:$0xff]
        %v264 = vld [vmem:[%s203 + $0xd0] sm:$0xff]
        %v265 = vld [vmem:[%s203 + $0xd8] sm:$0xff]
        %v266 = vld [vmem:[%s203 + $0xe0] sm:$0xff]
        %v267 = vld [vmem:[%s203 + $0xe8] sm:$0xff]
        %v268 = vld [vmem:[%s203 + $0xf0] sm:$0xff]
        %v269 = vld [vmem:[%s203 + $0xf8] sm:$0xff]
        %v270 = vld [vmem:[%s203 + $0x100] sm:$0xff]
        %v271 = vld [vmem:[%s203 + $0x108] sm:$0xff]
        %v272 = vld [vmem:[%s203 + $0x110] sm:$0xff]
        %v273 = vld [vmem:[%s203 + $0x118] sm:$0xff]
        %v274 = vmax.f32 %v238, 0.0
        %v275 = vmax.f32 %v239, 0.0
        %v276 = vmax.f32 %v240, 0.0
        %v277 = vmax.f32 %v241, 0.0
        %v278 = vmax.f32 %v242, 0.0
        %v279 = vmax.f32 %v243, 0.0
        %v280 = vmax.f32 %v244, 0.0
        %v281 = vmax.f32 %v245, 0.0
        %v282 = vmax.f32 %v246, 0.0
        %v283 = vmax.f32 %v247, 0.0
        %v284 = vmax.f32 %v248, 0.0
        %v285 = vmax.f32 %v249, 0.0
        %v286 = vmax.f32 %v250, 0.0
        %v287 = vmax.f32 %v251, 0.0
        %v288 = vmax.f32 %v252, 0.0
        %v289 = vmax.f32 %v253, 0.0
        %v290 = vmax.f32 %v254, 0.0
        %v291 = vmax.f32 %v255, 0.0
        %v292 = vmax.f32 %v256, 0.0
        %v293 = vmax.f32 %v257, 0.0
        %v294 = vmax.f32 %v258, 0.0
        %v295 = vmax.f32 %v259, 0.0
        %v296 = vmax.f32 %v260, 0.0
        %v297 = vmax.f32 %v261, 0.0
        %v298 = vmax.f32 %v262, 0.0
        %v299 = vmax.f32 %v263, 0.0
        %v300 = vmax.f32 %v264, 0.0
        %v301 = vmax.f32 %v265, 0.0
        %v302 = vmax.f32 %v266, 0.0
        %v303 = vmax.f32 %v267, 0.0
        %v304 = vmax.f32 %v268, 0.0
        %v305 = vmax.f32 %v269, 0.0
        %v306 = vmax.f32 %v270, 0.0
        %v307 = vmax.f32 %v271, 0.0
        %v308 = vmax.f32 %v272, 0.0
        %v309 = vmax.f32 %v273, 0.0
        %v310 = vpack.c.bf16 %v275, %v274
        %v311 = vpack.c.bf16 %v277, %v276
        %v312 = vpack.c.bf16 %v279, %v278
        %v313 = vpack.c.bf16 %v281, %v280
        %v314 = vpack.c.bf16 %v283, %v282
        %v315 = vpack.c.bf16 %v285, %v284
        %v316 = vpack.c.bf16 %v287, %v286
        %v317 = vpack.c.bf16 %v289, %v288
        %v318 = vpack.c.bf16 %v291, %v290
        %v319 = vpack.c.bf16 %v293, %v292
        %v320 = vpack.c.bf16 %v295, %v294
        %v321 = vpack.c.bf16 %v297, %v296
        %v322 = vpack.c.bf16 %v299, %v298
        %v323 = vpack.c.bf16 %v301, %v300
        %v324 = vpack.c.bf16 %v303, %v302
        %v325 = vpack.c.bf16 %v305, %v304
        %v326 = vpack.c.bf16 %v307, %v306
        %v327 = vpack.c.bf16 %v309, %v308
        %v328 = vld [vmem:[#allocation5] sm:$0xf]
        %v329 = vld [vmem:[#allocation5 + $0x4] sm:$0xf]
        %v330 = vld [vmem:[#allocation5 + $0x8] sm:$0xf]
        %v331 = vld [vmem:[#allocation5 + $0xc] sm:$0xf]
        %v332 = vld [vmem:[#allocation5 + $0x10] sm:$0xf]
        %v333 = vld [vmem:[#allocation5 + $0x14] sm:$0xf]
        %v334 = vld [vmem:[#allocation5 + $0x18] sm:$0xf]
        %v335 = vld [vmem:[#allocation5 + $0x1c] sm:$0xf]
        %v336 = vld [vmem:[#allocation5 + $0x20] sm:$0xf]
        %v337 = vld [vmem:[#allocation5 + $0x24] sm:$0xf]
        %v338 = vld [vmem:[#allocation5 + $0x28] sm:$0xf]
        %v339 = vld [vmem:[#allocation5 + $0x2c] sm:$0xf]
        %v340 = vld [vmem:[#allocation5 + $0x30] sm:$0xf]
        %v341 = vld [vmem:[#allocation5 + $0x34] sm:$0xf]
        %v342 = vld [vmem:[#allocation5 + $0x38] sm:$0xf]
        %v343 = vld [vmem:[#allocation5 + $0x3c] sm:$0xf]
        %v360 = vunpack.c.l.b16 %v328
        %v361 = vunpack.c.l.b16 %v329
        %v362 = vunpack.c.l.b16 %v330
        %v363 = vunpack.c.l.b16 %v331
        %v364 = vunpack.c.l.b16 %v332
        %v365 = vunpack.c.l.b16 %v333
        %v366 = vunpack.c.l.b16 %v334
        %v367 = vunpack.c.l.b16 %v335
        %v368 = vunpack.c.l.b16 %v336
        %v369 = vunpack.c.l.b16 %v337
        %v370 = vunpack.c.l.b16 %v338
        %v371 = vunpack.c.l.b16 %v339
        %v372 = vunpack.c.l.b16 %v340
        %v373 = vunpack.c.l.b16 %v341
        %v374 = vunpack.c.l.b16 %v342
        %v375 = vunpack.c.l.b16 %v343
        %v376 = vpack.c.b16 %v361, %v360
        %v377 = vpack.c.b16 %v363, %v362
        %v378 = vpack.c.b16 %v365, %v364
        %v379 = vpack.c.b16 %v367, %v366
        %v380 = vpack.c.b16 %v369, %v368
        %v381 = vpack.c.b16 %v371, %v370
        %v382 = vpack.c.b16 %v373, %v372
        %v383 = vpack.c.b16 %v375, %v374
        %392 = vmatprep.subr.bf16.mxu0 0
        %393 = vmatpush1.bf16.msra.mxu0 %v376
        %394 = vmatprep.subr.bf16.mxu0 0
        %395 = vmatpush1.bf16.msra.mxu0 %v377
        %396 = vmatprep.subr.bf16.mxu0 0
        %397 = vmatpush1.bf16.msra.mxu0 %v378
        %398 = vmatprep.subr.bf16.mxu0 0
        %399 = vmatpush1.bf16.msra.mxu0 %v379
        %400 = vmatprep.subr.bf16.mxu0 0
        %401 = vmatpush1.bf16.msra.mxu0 %v380
        %402 = vmatprep.subr.bf16.mxu0 0
        %403 = vmatpush1.bf16.msra.mxu0 %v381
        %404 = vmatprep.subr.bf16.mxu0 0
        %405 = vmatpush1.bf16.msra.mxu0 %v382
        %406 = vmatprep.subr.bf16.mxu0 0
        %407 = vmatpush1.bf16.msra.mxu0 %v383
        %408 = vmatprep.subr.bf16.mxu0 0
        %409 = vmatpush1.bf16.msra.mxu0 0
        %410 = vmatprep.subr.bf16.mxu0 0
        %411 = vmatpush1.bf16.msra.mxu0 0
        %412 = vmatprep.subr.bf16.mxu0 0
        %413 = vmatpush1.bf16.msra.mxu0 0
        %414 = vmatprep.subr.bf16.mxu0 0
        %415 = vmatpush1.bf16.msra.mxu0 0
        %416 = vmatprep.subr.bf16.mxu0 0
        %417 = vmatpush1.bf16.msra.mxu0 0
        %418 = vmatprep.subr.bf16.mxu0 0
        %419 = vmatpush1.bf16.msra.mxu0 0
        %420 = vmatprep.subr.bf16.mxu0 0
        %421 = vmatpush1.bf16.msra.mxu0 0
        %422 = vmatprep.subr.bf16.mxu0 0
        %423 = vmatpush1.bf16.msra.mxu0 0
        %424 = vmatprep.mubr.bf16.mxu0 0
        %425 = vmatmul.mubr.bf16.gmra.mrb[0].mxu0 %v310
        %v426 = vpop.f32.mrb[0].mxu0
        %v427 = vadd.f32 0.0, %v426
        %v428 = vpop.f32.mrb[0].mxu0
        %v429 = vpop.f32.mrb[0].mxu0
        %v430 = vadd.f32 0.0, %v429
        %v431 = vpop.f32.mrb[0].mxu0
        %432 = vmatprep.mubr.bf16.mxu0 0
        %433 = vmatmul.mubr.bf16.gmra.mrb[0].mxu0 %v311
        %v434 = vpop.f32.mrb[0].mxu0
        %v435 = vadd.f32 0.0, %v434
        %v436 = vpop.f32.mrb[0].mxu0
        %v437 = vpop.f32.mrb[0].mxu0
        %v438 = vadd.f32 0.0, %v437
        %v439 = vpop.f32.mrb[0].mxu0
        %440 = vmatprep.mubr.bf16.mxu0 0
        %441 = vmatmul.mubr.bf16.gmra.mrb[0].mxu0 %v312
        %v442 = vpop.f32.mrb[0].mxu0
        %v443 = vadd.f32 0.0, %v442
        %v444 = vpop.f32.mrb[0].mxu0
        %v445 = vpop.f32.mrb[0].mxu0
        %v446 = vadd.f32 0.0, %v445
        %v447 = vpop.f32.mrb[0].mxu0
        %448 = vmatprep.mubr.bf16.mxu0 0
        %449 = vmatmul.mubr.bf16.gmra.mrb[0].mxu0 %v313
        %v450 = vpop.f32.mrb[0].mxu0
        %v451 = vadd.f32 0.0, %v450
        %v452 = vpop.f32.mrb[0].mxu0
        %v453 = vpop.f32.mrb[0].mxu0
        %v454 = vadd.f32 0.0, %v453
        %v455 = vpop.f32.mrb[0].mxu0
        %456 = vmatprep.mubr.bf16.mxu0 0
        %457 = vmatmul.mubr.bf16.gmra.mrb[0].mxu0 %v314
        %v458 = vpop.f32.mrb[0].mxu0
        %v459 = vadd.f32 0.0, %v458
        %v460 = vpop.f32.mrb[0].mxu0
        %v461 = vpop.f32.mrb[0].mxu0
        %v462 = vadd.f32 0.0, %v461
        %v463 = vpop.f32.mrb[0].mxu0
        %464 = vmatprep.mubr.bf16.mxu0 0
        %465 = vmatmul.mubr.bf16.gmra.mrb[0].mxu0 %v315
        %v466 = vpop.f32.mrb[0].mxu0
        %v467 = vadd.f32 0.0, %v466
        %v468 = vpop.f32.mrb[0].mxu0
        %v469 = vpop.f32.mrb[0].mxu0
        %v470 = vadd.f32 0.0, %v469
        %v471 = vpop.f32.mrb[0].mxu0
        %472 = vmatprep.mubr.bf16.mxu0 0
        %473 = vmatmul.mubr.bf16.gmra.mrb[0].mxu0 %v316
        %v474 = vpop.f32.mrb[0].mxu0
        %v475 = vadd.f32 0.0, %v474
        %v476 = vpop.f32.mrb[0].mxu0
        %v477 = vpop.f32.mrb[0].mxu0
        %v478 = vadd.f32 0.0, %v477
        %v479 = vpop.f32.mrb[0].mxu0
        %480 = vmatprep.mubr.bf16.mxu0 0
        %481 = vmatmul.mubr.bf16.gmra.mrb[0].mxu0 %v317
        %v482 = vpop.f32.mrb[0].mxu0
        %v483 = vadd.f32 0.0, %v482
        %v484 = vpop.f32.mrb[0].mxu0
        %v485 = vpop.f32.mrb[0].mxu0
        %v486 = vadd.f32 0.0, %v485
        %v487 = vpop.f32.mrb[0].mxu0
        %488 = vmatprep.mubr.bf16.mxu0 0
        %489 = vmatmul.mubr.bf16.gmra.mrb[0].mxu0 %v318
        %v490 = vpop.f32.mrb[0].mxu0
        %v491 = vadd.f32 0.0, %v490
        %v492 = vpop.f32.mrb[0].mxu0
        %v493 = vpop.f32.mrb[0].mxu0
        %v494 = vadd.f32 0.0, %v493
        %v495 = vpop.f32.mrb[0].mxu0
        %496 = vmatprep.mubr.bf16.mxu0 0
        %497 = vmatmul.mubr.bf16.gmra.mrb[0].mxu0 %v319
        %v498 = vpop.f32.mrb[0].mxu0
        %v499 = vadd.f32 0.0, %v498
        %v500 = vpop.f32.mrb[0].mxu0
        %v501 = vpop.f32.mrb[0].mxu0
        %v502 = vadd.f32 0.0, %v501
        %v503 = vpop.f32.mrb[0].mxu0
        %504 = vmatprep.mubr.bf16.mxu0 0
        %505 = vmatmul.mubr.bf16.gmra.mrb[0].mxu0 %v320
        %v506 = vpop.f32.mrb[0].mxu0
        %v507 = vadd.f32 0.0, %v506
        %v508 = vpop.f32.mrb[0].mxu0
        %v509 = vpop.f32.mrb[0].mxu0
        %v510 = vadd.f32 0.0, %v509
        %v511 = vpop.f32.mrb[0].mxu0
        %512 = vmatprep.mubr.bf16.mxu0 0
        %513 = vmatmul.mubr.bf16.gmra.mrb[0].mxu0 %v321
        %v514 = vpop.f32.mrb[0].mxu0
        %v515 = vadd.f32 0.0, %v514
        %v516 = vpop.f32.mrb[0].mxu0
        %v517 = vpop.f32.mrb[0].mxu0
        %v518 = vadd.f32 0.0, %v517
        %v519 = vpop.f32.mrb[0].mxu0
        %520 = vmatprep.mubr.bf16.mxu0 0
        %521 = vmatmul.mubr.bf16.gmra.mrb[0].mxu0 %v322
        %v522 = vpop.f32.mrb[0].mxu0
        %v523 = vadd.f32 0.0, %v522
        %v524 = vpop.f32.mrb[0].mxu0
        %v525 = vpop.f32.mrb[0].mxu0
        %v526 = vadd.f32 0.0, %v525
        %v527 = vpop.f32.mrb[0].mxu0
        %528 = vmatprep.mubr.bf16.mxu0 0
        %529 = vmatmul.mubr.bf16.gmra.mrb[0].mxu0 %v323
        %v530 = vpop.f32.mrb[0].mxu0
        %v531 = vadd.f32 0.0, %v530
        %v532 = vpop.f32.mrb[0].mxu0
        %v533 = vpop.f32.mrb[0].mxu0
        %v534 = vadd.f32 0.0, %v533
        %v535 = vpop.f32.mrb[0].mxu0
        %536 = vmatprep.mubr.bf16.mxu0 0
        %537 = vmatmul.mubr.bf16.gmra.mrb[0].mxu0 %v324
        %v538 = vpop.f32.mrb[0].mxu0
        %v539 = vadd.f32 0.0, %v538
        %v540 = vpop.f32.mrb[0].mxu0
        %v541 = vpop.f32.mrb[0].mxu0
        %v542 = vadd.f32 0.0, %v541
        %v543 = vpop.f32.mrb[0].mxu0
        %544 = vmatprep.mubr.bf16.mxu0 0
        %545 = vmatmul.mubr.bf16.gmra.mrb[0].mxu0 %v325
        %v546 = vpop.f32.mrb[0].mxu0
        %v547 = vadd.f32 0.0, %v546
        %v548 = vpop.f32.mrb[0].mxu0
        %v549 = vpop.f32.mrb[0].mxu0
        %v550 = vadd.f32 0.0, %v549
        %v551 = vpop.f32.mrb[0].mxu0
        %552 = vmatprep.mubr.bf16.mxu0 0
        %553 = vmatmul.mubr.bf16.gmra.mrb[0].mxu0 %v326
        %v554 = vpop.f32.mrb[0].mxu0
        %v555 = vadd.f32 0.0, %v554
        %v556 = vpop.f32.mrb[0].mxu0
        %v557 = vpop.f32.mrb[0].mxu0
        %v558 = vadd.f32 0.0, %v557
        %v559 = vpop.f32.mrb[0].mxu0
        %560 = vmatprep.mubr.bf16.mxu0 0
        %561 = vmatmul.mubr.bf16.gmra.mrb[0].mxu0 %v327
        %v562 = vpop.f32.mrb[0].mxu0
        %v563 = vadd.f32 0.0, %v562
        %v564 = vpop.f32.mrb[0].mxu0
        %v565 = vpop.f32.mrb[0].mxu0
        %v566 = vadd.f32 0.0, %v565
        %v567 = vpop.f32.mrb[0].mxu0
        %568 = vdwg.mxu0
        %v569 = vpack.c.bf16 %v430, %v427
        %v570 = vpack.c.bf16 %v438, %v435
        %v571 = vpack.c.bf16 %v446, %v443
        %v572 = vpack.c.bf16 %v454, %v451
        %v573 = vpack.c.bf16 %v462, %v459
        %v574 = vpack.c.bf16 %v470, %v467
        %v575 = vpack.c.bf16 %v478, %v475
        %v576 = vpack.c.bf16 %v486, %v483
        %v577 = vpack.c.bf16 %v494, %v491
        %v578 = vpack.c.bf16 %v502, %v499
        %v579 = vpack.c.bf16 %v510, %v507
        %v580 = vpack.c.bf16 %v518, %v515
        %v581 = vpack.c.bf16 %v526, %v523
        %v582 = vpack.c.bf16 %v534, %v531
        %v583 = vpack.c.bf16 %v542, %v539
        %v584 = vpack.c.bf16 %v550, %v547
        %v585 = vpack.c.bf16 %v558, %v555
        %v586 = vpack.c.bf16 %v566, %v563
        %v605 = vunpack.c.l.b16 %v569
        %v606 = vunpack.c.h.b16 %v569
        %v607 = vunpack.c.l.b16 %v570
        %v608 = vunpack.c.h.b16 %v570
        %v609 = vunpack.c.l.b16 %v571
        %v610 = vunpack.c.h.b16 %v571
        %v611 = vunpack.c.l.b16 %v572
        %v612 = vunpack.c.h.b16 %v572
        %v613 = vunpack.c.l.b16 %v573
        %v614 = vunpack.c.h.b16 %v573
        %v615 = vunpack.c.l.b16 %v574
        %v616 = vunpack.c.h.b16 %v574
        %v617 = vunpack.c.l.b16 %v575
        %v618 = vunpack.c.h.b16 %v575
        %v619 = vunpack.c.l.b16 %v576
        %v620 = vunpack.c.h.b16 %v576
        %v621 = vunpack.c.l.b16 %v577
        %v622 = vunpack.c.h.b16 %v577
        %v623 = vunpack.c.l.b16 %v578
        %v624 = vunpack.c.h.b16 %v578
        %v625 = vunpack.c.l.b16 %v579
        %v626 = vunpack.c.h.b16 %v579
        %v627 = vunpack.c.l.b16 %v580
        %v628 = vunpack.c.h.b16 %v580
        %v629 = vunpack.c.l.b16 %v581
        %v630 = vunpack.c.h.b16 %v581
        %v631 = vunpack.c.l.b16 %v582
        %v632 = vunpack.c.h.b16 %v582
        %v633 = vunpack.c.l.b16 %v583
        %v634 = vunpack.c.h.b16 %v583
        %v635 = vunpack.c.l.b16 %v584
        %v636 = vunpack.c.h.b16 %v584
        %v637 = vunpack.c.l.b16 %v585
        %v638 = vunpack.c.h.b16 %v585
        %v639 = vunpack.c.l.b16 %v586
        %v640 = vunpack.c.h.b16 %v586
        %v641 = vpack.c.b16 %v605, %v605
        %v642 = vpack.c.b16 %v606, %v606
        %v643 = vpack.c.b16 %v607, %v607
        %v644 = vpack.c.b16 %v608, %v608
        %v645 = vpack.c.b16 %v609, %v609
        %v646 = vpack.c.b16 %v610, %v610
        %v647 = vpack.c.b16 %v611, %v611
        %v648 = vpack.c.b16 %v612, %v612
        %v649 = vpack.c.b16 %v613, %v613
        %v650 = vpack.c.b16 %v614, %v614
        %v651 = vpack.c.b16 %v615, %v615
        %v652 = vpack.c.b16 %v616, %v616
        %v653 = vpack.c.b16 %v617, %v617
        %v654 = vpack.c.b16 %v618, %v618
        %v655 = vpack.c.b16 %v619, %v619
        %v656 = vpack.c.b16 %v620, %v620
        %v657 = vpack.c.b16 %v621, %v621
        %v658 = vpack.c.b16 %v622, %v622
        %v659 = vpack.c.b16 %v623, %v623
        %v660 = vpack.c.b16 %v624, %v624
        %v661 = vpack.c.b16 %v625, %v625
        %v662 = vpack.c.b16 %v626, %v626
        %v663 = vpack.c.b16 %v627, %v627
        %v664 = vpack.c.b16 %v628, %v628
        %v665 = vpack.c.b16 %v629, %v629
        %v666 = vpack.c.b16 %v630, %v630
        %v667 = vpack.c.b16 %v631, %v631
        %v668 = vpack.c.b16 %v632, %v632
        %v669 = vpack.c.b16 %v633, %v633
        %v670 = vpack.c.b16 %v634, %v634
        %v671 = vpack.c.b16 %v635, %v635
        %v672 = vpack.c.b16 %v636, %v636
        %v673 = vpack.c.b16 %v637, %v637
        %v674 = vpack.c.b16 %v638, %v638
        %v675 = vpack.c.b16 %v639, %v639
        %v676 = vpack.c.b16 %v640, %v640
        %713 = vst [vmem:[%s227] sm:$0xf] %v641
        %714 = vst [vmem:[%s227 + $0x4] sm:$0xf] %v642
        %715 = vst [vmem:[%s227 + $0x8] sm:$0xf] %v643
        %716 = vst [vmem:[%s227 + $0xc] sm:$0xf] %v644
        %717 = vst [vmem:[%s227 + $0x10] sm:$0xf] %v645
        %718 = vst [vmem:[%s227 + $0x14] sm:$0xf] %v646
        %719 = vst [vmem:[%s227 + $0x18] sm:$0xf] %v647
        %720 = vst [vmem:[%s227 + $0x1c] sm:$0xf] %v648
        %721 = vst [vmem:[%s227 + $0x20] sm:$0xf] %v649
        %722 = vst [vmem:[%s227 + $0x24] sm:$0xf] %v650
        %723 = vst [vmem:[%s227 + $0x28] sm:$0xf] %v651
        %724 = vst [vmem:[%s227 + $0x2c] sm:$0xf] %v652
        %725 = vst [vmem:[%s227 + $0x30] sm:$0xf] %v653
        %726 = vst [vmem:[%s227 + $0x34] sm:$0xf] %v654
        %727 = vst [vmem:[%s227 + $0x38] sm:$0xf] %v655
        %728 = vst [vmem:[%s227 + $0x3c] sm:$0xf] %v656
        %729 = vst [vmem:[%s227 + $0x40] sm:$0xf] %v657
        %730 = vst [vmem:[%s227 + $0x44] sm:$0xf] %v658
        %731 = vst [vmem:[%s227 + $0x48] sm:$0xf] %v659
        %732 = vst [vmem:[%s227 + $0x4c] sm:$0xf] %v660
        %733 = vst [vmem:[%s227 + $0x50] sm:$0xf] %v661
        %734 = vst [vmem:[%s227 + $0x54] sm:$0xf] %v662
        %735 = vst [vmem:[%s227 + $0x58] sm:$0xf] %v663
        %736 = vst [vmem:[%s227 + $0x5c] sm:$0xf] %v664
        %737 = vst [vmem:[%s227 + $0x60] sm:$0xf] %v665
        %738 = vst [vmem:[%s227 + $0x64] sm:$0xf] %v666
        %739 = vst [vmem:[%s227 + $0x68] sm:$0xf] %v667
        %740 = vst [vmem:[%s227 + $0x6c] sm:$0xf] %v668
        %741 = vst [vmem:[%s227 + $0x70] sm:$0xf] %v669
        %742 = vst [vmem:[%s227 + $0x74] sm:$0xf] %v670
        %743 = vst [vmem:[%s227 + $0x78] sm:$0xf] %v671
        %744 = vst [vmem:[%s227 + $0x7c] sm:$0xf] %v672
        %745 = vst [vmem:[%s227 + $0x80] sm:$0xf] %v673
        %746 = vst [vmem:[%s227 + $0x84] sm:$0xf] %v674
        %747 = vst [vmem:[%s227 + $0x88] sm:$0xf] %v675
        %748 = vst [vmem:[%s227 + $0x8c] sm:$0xf] %v676
        %v749 = vadd.f32 %v427, %v430
        %v750 = vadd.f32 %v749, %v435
        %v751 = vadd.f32 %v750, %v438
        %v752 = vadd.f32 %v751, %v443
        %v753 = vadd.f32 %v752, %v446
        %v754 = vadd.f32 %v753, %v451
        %v755 = vadd.f32 %v754, %v454
        %v756 = vadd.f32 %v755, %v459
        %v757 = vadd.f32 %v756, %v462
        %v758 = vadd.f32 %v757, %v467
        %v759 = vadd.f32 %v758, %v470
        %v760 = vadd.f32 %v759, %v475
        %v761 = vadd.f32 %v760, %v478
        %v762 = vadd.f32 %v761, %v483
        %v763 = vadd.f32 %v762, %v486
        %v764 = vadd.f32 %v763, %v491
        %v765 = vadd.f32 %v764, %v494
        %v766 = vadd.f32 %v765, %v499
        %v767 = vadd.f32 %v766, %v502
        %v768 = vadd.f32 %v767, %v507
        %v769 = vadd.f32 %v768, %v510
        %v770 = vadd.f32 %v769, %v515
        %v771 = vadd.f32 %v770, %v518
        %v772 = vadd.f32 %v771, %v523
        %v773 = vadd.f32 %v772, %v526
        %v774 = vadd.f32 %v773, %v531
        %v775 = vadd.f32 %v774, %v534
        %v776 = vadd.f32 %v775, %v539
        %v777 = vadd.f32 %v776, %v542
        %v778 = vadd.f32 %v777, %v547
        %v779 = vadd.f32 %v778, %v550
        %v780 = vadd.f32 %v779, %v555
        %v781 = vadd.f32 %v780, %v558
        %v782 = vadd.f32 %v781, %v563
        %v783 = vadd.f32 %v782, %v566
        %v784 = vrot.slane %v783, 4
        %v785 = vadd.f32 %v783, %v784
        %v786 = vrot.slane %v785, 2
        %v787 = vadd.f32 %v785, %v786
        %v788 = vrot.slane %v787, 1
        %v789 = vadd.f32 %v787, %v788
        %790 = vst [vmem:[%s234] sm:$0x1] %v789
        %v791 = vmul.f32 %v427, %v427
        %v792 = vmul.f32 %v430, %v430
        %v793 = vmul.f32 %v435, %v435
        %v794 = vmul.f32 %v438, %v438
        %v795 = vmul.f32 %v443, %v443
        %v796 = vmul.f32 %v446, %v446
        %v797 = vmul.f32 %v451, %v451
        %v798 = vmul.f32 %v454, %v454
        %v799 = vmul.f32 %v459, %v459
        %v800 = vmul.f32 %v462, %v462
        %v801 = vmul.f32 %v467, %v467
        %v802 = vmul.f32 %v470, %v470
        %v803 = vmul.f32 %v475, %v475
        %v804 = vmul.f32 %v478, %v478
        %v805 = vmul.f32 %v483, %v483
        %v806 = vmul.f32 %v486, %v486
        %v807 = vmul.f32 %v491, %v491
        %v808 = vmul.f32 %v494, %v494
        %v809 = vmul.f32 %v499, %v499
        %v810 = vmul.f32 %v502, %v502
        %v811 = vmul.f32 %v507, %v507
        %v812 = vmul.f32 %v510, %v510
        %v813 = vmul.f32 %v515, %v515
        %v814 = vmul.f32 %v518, %v518
        %v815 = vmul.f32 %v523, %v523
        %v816 = vmul.f32 %v526, %v526
        %v817 = vmul.f32 %v531, %v531
        %v818 = vmul.f32 %v534, %v534
        %v819 = vmul.f32 %v539, %v539
        %v820 = vmul.f32 %v542, %v542
        %v821 = vmul.f32 %v547, %v547
        %v822 = vmul.f32 %v550, %v550
        %v823 = vmul.f32 %v555, %v555
        %v824 = vmul.f32 %v558, %v558
        %v825 = vmul.f32 %v563, %v563
        %v826 = vmul.f32 %v566, %v566
        %v827 = vadd.f32 %v791, %v792
        %v828 = vadd.f32 %v827, %v793
        %v829 = vadd.f32 %v828, %v794
        %v830 = vadd.f32 %v829, %v795
        %v831 = vadd.f32 %v830, %v796
        %v832 = vadd.f32 %v831, %v797
        %v833 = vadd.f32 %v832, %v798
        %v834 = vadd.f32 %v833, %v799
        %v835 = vadd.f32 %v834, %v800
        %v836 = vadd.f32 %v835, %v801
        %v837 = vadd.f32 %v836, %v802
        %v838 = vadd.f32 %v837, %v803
        %v839 = vadd.f32 %v838, %v804
        %v840 = vadd.f32 %v839, %v805
        %v841 = vadd.f32 %v840, %v806
        %v842 = vadd.f32 %v841, %v807
        %v843 = vadd.f32 %v842, %v808
        %v844 = vadd.f32 %v843, %v809
        %v845 = vadd.f32 %v844, %v810
        %v846 = vadd.f32 %v845, %v811
        %v847 = vadd.f32 %v846, %v812
        %v848 = vadd.f32 %v847, %v813
        %v849 = vadd.f32 %v848, %v814
        %v850 = vadd.f32 %v849, %v815
        %v851 = vadd.f32 %v850, %v816
        %v852 = vadd.f32 %v851, %v817
        %v853 = vadd.f32 %v852, %v818
        %v854 = vadd.f32 %v853, %v819
        %v855 = vadd.f32 %v854, %v820
        %v856 = vadd.f32 %v855, %v821
        %v857 = vadd.f32 %v856, %v822
        %v858 = vadd.f32 %v857, %v823
        %v859 = vadd.f32 %v858, %v824
        %v860 = vadd.f32 %v859, %v825
        %v861 = vadd.f32 %v860, %v826
        %v862 = vrot.slane %v861, 4
        %v863 = vadd.f32 %v861, %v862
        %v864 = vrot.slane %v863, 2
        %v865 = vadd.f32 %v863, %v864
        %v866 = vrot.slane %v865, 1
        %v867 = vadd.f32 %v865, %v866
        %868 = vst [vmem:[%s234 + $0x1] sm:$0x1] %v867
        %s869 = sand.u32 %s96, 1
        %s870 = scalar_lea.sflag [#allocation4], %s869
        %s871 = sand.u32 %s96, 1
        %s872 = smul.addr %s871, 144
        %s873 = scalar_lea.vmem [#allocation7], %s872
        %s874 = sand.u32 %s124, 1
        %s875 = scalar_lea.sflag [#allocation9], %s874
        %s876 = sand.u32 %s124, 1
        %s877 = smul.addr %s876, 2
        %s878 = scalar_lea.vmem [#allocation8], %s877
        // Predicated region
        $region37: #{tpu_custom_call.1} parent=27 // pred_check
          %p879 = pneg %p106
        $region38: #{tpu_custom_call.1} parent=27 // pred_check_branch
          %881 = sbr.rel (%p879) target = $region40
        $region39: #{tpu_custom_call.1} parent=27 // pred_region
          %s882 = smul.u32 36, %s30
          %s884 = ssub.s32 2304, 2304
          %885 = vsyncadd %s870, %s884
          %s886 = smul.addr %s29, 72
          %s887 = sadd.s32 %s882, %s886
          %s888 = smul.addr %s887, 64
          %s889 = scalar_lea.hbm %s2, %s888
          %s890 = sshll.u32 %s873, 4
          %s891 = int_to_ptr.vmem [resolvable:$true] %s890
          %896 = dma.vmem_to_hbm [thread:$0]  %s891, 2304, %s889, %s870, 64, 64, 4
        $region40: #{tpu_custom_call.1} parent=27 // pred_fallthru
          _
        // Predicated region
        $region41: #{tpu_custom_call.1} parent=27 // pred_check
          %p897 = pneg %p134
        $region42: #{tpu_custom_call.1} parent=27 // pred_check_branch
          %899 = sbr.rel (%p897) target = $region44
        $region43: #{tpu_custom_call.1} parent=27 // pred_region
          %s901 = ssub.s32 32, 32
          %902 = vsyncadd %s875, %s901
          %s903 = smul.addr %s29, 2
          %s904 = sadd.s32 %s30, %s903
          %s905 = smul.addr %s904, 32
          %s906 = scalar_lea.hbm %s3, %s905
          %s908 = sshll.u32 %s878, 4
          %s909 = int_to_ptr.vmem [resolvable:$true] %s908
          %911 = dma.vmem_to_hbm [thread:$0]  %s909, 32, %s906, %s875
        $region44: #{tpu_custom_call.1} parent=27 // pred_fallthru
          _
      $region28: #{tpu_custom_call.1} parent=5 // pred_fallthru
        _
      %p912 = scmp.le.s32.totalorder 2, %s20
      // Predicated region
      $region45: #{tpu_custom_call.1} parent=5 // pred_check
        %p913 = pneg %p912
      $region46: #{tpu_custom_call.1} parent=5 // pred_check_branch
        %915 = sbr.rel (%p913) target = $region48
      $region47: #{tpu_custom_call.1} parent=5 // pred_region
        %s916 = ssub.s32 %s20, 2
        // Predicated region
        $region49: #{tpu_custom_call.1} parent=47 // pred_check
          %p917 = pneg %p112
        $region50: #{tpu_custom_call.1} parent=47 // pred_check_branch
          %919 = sbr.rel (%p917) target = $region52
        $region51: #{tpu_custom_call.1} parent=47 // pred_region
          %s920 = sand.u32 %s97, 1
          %s921 = scalar_lea.sflag [#allocation4], %s920
          %s922 = sand.u32 %s97, 1
          %s923 = smul.addr %s922, 144
          %s924 = scalar_lea.vmem [#allocation7], %s923
          %925 = dma.done %s921, 2304
        $region52: #{tpu_custom_call.1} parent=47 // pred_fallthru
          _
        // Predicated region
        $region53: #{tpu_custom_call.1} parent=47 // pred_check
          %p926 = pneg %p140
        $region54: #{tpu_custom_call.1} parent=47 // pred_check_branch
          %928 = sbr.rel (%p926) target = $region56
        $region55: #{tpu_custom_call.1} parent=47 // pred_region
          %s929 = sand.u32 %s125, 1
          %s930 = scalar_lea.sflag [#allocation9], %s929
          %s931 = sand.u32 %s125, 1
          %s932 = smul.addr %s931, 2
          %s933 = scalar_lea.vmem [#allocation8], %s932
          %934 = dma.done %s930, 32
        $region56: #{tpu_custom_call.1} parent=47 // pred_fallthru
          _
      $region48: #{tpu_custom_call.1} parent=5 // pred_fallthru
        _
    $region6: #{tpu_custom_call.1} parent=1 // loop_footer
      %s24 = sadd.s32 1, %s20
    $region7: #{tpu_custom_call.1} parent=1 // loop_footer_branch
      %19 = sbr.rel target = $region3
    $region8: #{tpu_custom_call.1} parent=1 // loop_exit
      _
    %935 = vsyncpa [#allocation3], 1
    %s936 = scalar_lea.sflag [#allocation3], 1
    %937 = vsyncpa %s936, 1
    %938 = vsyncpa [#allocation6], 1
    %939 = vsyncpa [#allocation4], 1
    %s940 = scalar_lea.sflag [#allocation4], 1
    %941 = vsyncpa %s940, 1
    %942 = vsyncpa [#allocation9], 1
    %s943 = scalar_lea.sflag [#allocation9], 1
    %944 = vsyncpa %s943, 1

</llo_original>
